<compile_context>
chip_gen: v7x
topology: tpu7x:2x2x1
jax: 0.10.0
libtpu: 0.0.40
codegen_flags: <defaults>
</compile_context>

<pallas_src>
import functools

import jax
import jax.numpy as jnp
from jax.experimental import pallas as pl
from jax.experimental.pallas import tpu as pltpu


# ---------------------------------------------------------------------------
# Pallas kernel: fused CSAM forward for one batch element
# ---------------------------------------------------------------------------
def _csam_kernel(w_ref, b_ref, g_ref, x_ref, xout_ref, attn_ref, pad_ref,
                 *, H, W, padf):
    """w_ref:(27,) SMEM Conv3d weights (kd,kh,kw row-major), b_ref:(1,) bias,
    g_ref:(1,) gamma, x_ref:(1,C,H*W) input, xout_ref/attn_ref:(1,C,H*W),
    pad_ref:(C+2, H*W + 2*padf) VMEM scratch used as an in-kernel zero halo."""
    C = x_ref.shape[1]
    HW = H * W

    x0 = x_ref[0]                                     # (C, HW) f32

    # Build the zero halo in VMEM: 1 channel row above/below, `padf` lanes
    # (>= W+1, multiple of 128 -> aligned interior store) on each flat side.
    pad_ref[...] = jnp.zeros_like(pad_ref)
    pad_ref[1:1 + C, padf:padf + HW] = x0

    # Column index within a row of width W, for masking the two tap groups
    # whose flat shift crosses a row boundary (w-1 / w+1).
    col = jax.lax.broadcasted_iota(jnp.int32, (C, HW), 1) % W

    # 27-tap stencil: tap (oc,oh,ow) is the halo'd block shifted by
    # (oc, oh*W + ow).  Channel / height out-of-range reads land in the zero
    # halo; width out-of-range reads are masked once per `ow` group.
    acc = None
    for ow in (-1, 0, 1):
        part = None
        for oc in (-1, 0, 1):
            for oh in (-1, 0, 1):
                k = (oc + 1) * 9 + (oh + 1) * 3 + (ow + 1)   # (kd,kh,kw) flat
                start = padf + oh * W + ow
                tap = pad_ref[1 + oc:1 + oc + C, start:start + HW]
                term = w_ref[k] * tap
                part = term if part is None else part + term
        if ow == -1:
            part = jnp.where(col >= 1, part, 0.0)
        elif ow == 1:
            part = jnp.where(col <= W - 2, part, 0.0)
        acc = part if acc is None else acc + part
    acc = acc + b_ref[0]

    # sigmoid = 1 / (1 + exp(-acc)); exp + approx reciprocal both go to EUP.
    gate = pl.reciprocal(1.0 + jnp.exp(-acc), approx=True)
    attn = g_ref[0] * gate

    attn_ref[0] = attn
    xout_ref[0] = x0 * attn + x0


# ---------------------------------------------------------------------------
# Wrapper
# ---------------------------------------------------------------------------
def csam_forward(x, params):
    """x: (B, C, H, W) float -> (x * attn + x, attn), both (B, C, H, W)."""
    conv_w = params["conv_w"].astype(jnp.float32)          # (1, 1, 3, 3, 3)
    conv_b = params["conv_b"].astype(jnp.float32).reshape(1)
    gamma = params["gamma"].astype(jnp.float32).reshape(1)
    x = x.astype(jnp.float32)
    B, C, H, W = x.shape
    HW = H * W
    padf = ((W + 1 + 127) // 128) * 128     # lane-aligned flat halo >= W + 1

    x_flat = x.reshape(B, C, HW)            # free reshape; lane-dense layout
    w_flat = conv_w.reshape(27)

    smem_spec = pl.BlockSpec(memory_space=pltpu.MemorySpace.SMEM)
    kernel = functools.partial(_csam_kernel, H=H, W=W, padf=padf)

    x_out, attn = pl.pallas_call(
        kernel,
        out_shape=(jax.ShapeDtypeStruct((B, C, HW), jnp.float32),
                   jax.ShapeDtypeStruct((B, C, HW), jnp.float32)),
        grid=(B,),
        in_specs=[smem_spec, smem_spec, smem_spec,
                  pl.BlockSpec((1, C, HW), lambda b: (b, 0, 0))],
        out_specs=[pl.BlockSpec((1, C, HW), lambda b: (b, 0, 0)),
                   pl.BlockSpec((1, C, HW), lambda b: (b, 0, 0))],
        scratch_shapes=[pltpu.VMEM((C + 2, HW + 2 * padf), jnp.float32)],
        compiler_params=pltpu.CompilerParams(
            dimension_semantics=("parallel",)),
    )(w_flat, conv_b, gamma, x_flat)
    return x_out.reshape(B, C, H, W), attn.reshape(B, C, H, W)


# ---------------------------------------------------------------------------
# Deterministic parameter init (mirrors nn.Conv3d default + gamma = 0)
# ---------------------------------------------------------------------------
def init_params(key):
    fan_in = 1 * 3 * 3 * 3
    bound = 1.0 / fan_in ** 0.5
    kw, kb = jax.random.split(key)
    return {
        "conv_w": jax.random.uniform(kw, (1, 1, 3, 3, 3), jnp.float32,
                                     -bound, bound),
        "conv_b": jax.random.uniform(kb, (1,), jnp.float32, -bound, bound),
        "gamma": jnp.zeros((1,), jnp.float32),   # nn.Parameter(torch.zeros(1))
    }


# ---------------------------------------------------------------------------
# Pure-JAX reference (same math) for a sanity check
# ---------------------------------------------------------------------------
def _reference(x, params):
    x = x.astype(jnp.float32)
    w = params["conv_w"].astype(jnp.float32)
    b = params["conv_b"].astype(jnp.float32)
    g = params["gamma"].astype(jnp.float32).reshape(())
    x5 = x[:, None]                                         # (B, 1, C, H, W)
    y = jax.lax.conv_general_dilated(
        x5, w, window_strides=(1, 1, 1), padding=[(1, 1)] * 3,
        dimension_numbers=("NCDHW", "OIDHW", "NCDHW"))
    y = y + b.reshape(1, 1, 1, 1, 1)
    attn = (g * jax.nn.sigmoid(y)).reshape(x.shape)
    return x * attn + x, attn


if __name__ == "__main__":
    key = jax.random.PRNGKey(0)
    k_x, k_p = jax.random.split(key)

    # Small shapes consistent with the module's forward: (B, C, H, W).
    B, C, H, W = 2, 4, 16, 16
    x = jax.random.normal(k_x, (B, C, H, W), jnp.float32)
    params = init_params(k_p)
    # gamma initializes to 0 in the module (output == input); use a nonzero
    # value here so the test exercises the full attention path.
    params["gamma"] = jnp.array([0.5], jnp.float32)

    x_out, attn = csam_forward(x, params)
    x_out = jax.block_until_ready(x_out)
    attn = jax.block_until_ready(attn)

    assert x_out.shape == (B, C, H, W), x_out.shape
    assert attn.shape == (B, C, H, W), attn.shape

    x_ref, attn_ref = _reference(x, params)
    x_ref = jax.block_until_ready(x_ref)
    attn_ref = jax.block_until_ready(attn_ref)

    err_x = float(jnp.max(jnp.abs(x_out - x_ref)))
    err_a = float(jnp.max(jnp.abs(attn - attn_ref)))
    assert err_x < 1e-2, f"x_out max abs err too large: {err_x}"
    assert err_a < 1e-2, f"attn max abs err too large: {err_a}"

    print("KERNEL_OK")
</pallas_src>

<mosaic_0001>
module attributes {stable_mosaic.version = 11 : i64} {
  func.func @_csam_kernel(%arg0: i32, %arg1: memref<27xf32, #tpu.memory_space<smem>>, %arg2: memref<1xf32, #tpu.memory_space<smem>>, %arg3: memref<1xf32, #tpu.memory_space<smem>>, %arg4: memref<1x4x256xf32, #tpu.memory_space<vmem>>, %arg5: memref<1x4x256xf32, #tpu.memory_space<vmem>>, %arg6: memref<1x4x256xf32, #tpu.memory_space<vmem>>, %arg7: memref<6x512xf32, #tpu.memory_space<vmem>>) attributes {dimension_semantics = [#tpu.dimension_semantics<parallel>], iteration_bounds = array<i64: 2>, scalar_prefetch = 0 : i64, scratch_operands = 1 : i64, tpu.core_type = #tpu.core_type<tc>, window_params = [{transform_indices = @transform_0, window_bounds = array<i64: 27>}, {transform_indices = @transform_1, window_bounds = array<i64: 1>}, {transform_indices = @transform_2, window_bounds = array<i64: 1>}, {transform_indices = @transform_3, window_bounds = array<i64: 1, 4, 256>}, {transform_indices = @transform_4, window_bounds = array<i64: 1, 4, 256>}, {transform_indices = @transform_5, window_bounds = array<i64: 1, 4, 256>}]} {
    %c0 = arith.constant 0 : index
    %c0_0 = arith.constant 0 : index
    %c0_1 = arith.constant 0 : index
    %0 = vector.load %arg4[%c0, %c0_0, %c0_1] : memref<1x4x256xf32, #tpu.memory_space<vmem>>, vector<1x4x256xf32>
    %1 = vector.shape_cast %0 : vector<1x4x256xf32> to vector<4x256xf32>
    %cst = arith.constant 0.000000e+00 : f32
    %2 = vector.broadcast %cst : f32 to vector<6x512xf32>
    %c0_2 = arith.constant 0 : index
    %c0_3 = arith.constant 0 : index
    %3 = vector.load %arg7[%c0_2, %c0_3] : memref<6x512xf32, #tpu.memory_space<vmem>>, vector<6x512xf32>
    tpu.vector_store %arg7[%c0_2, %c0_3], %2 {strides = array<i32>} : memref<6x512xf32, #tpu.memory_space<vmem>>, vector<6x512xf32>,
    %c1 = arith.constant 1 : index
    %c128 = arith.constant 128 : index
    %4 = vector.load %arg7[%c1, %c128] : memref<6x512xf32, #tpu.memory_space<vmem>>, vector<4x256xf32>
    tpu.vector_store %arg7[%c1, %c128], %1 {strides = array<i32>} : memref<6x512xf32, #tpu.memory_space<vmem>>, vector<4x256xf32>,
    %5 = tpu.iota {dimensions = array<i32: 1>} : vector<4x256xi32>
    %c16_i32 = arith.constant 16 : i32
    %c0_i32 = arith.constant 0 : i32
    %6 = arith.cmpi eq, %c16_i32, %c0_i32 : i32
    %c1_i32 = arith.constant 1 : i32
    %7 = arith.select %6, %c1_i32, %c16_i32 : i32
    %8 = vector.broadcast %7 : i32 to vector<4x256xi32>
    %9 = arith.remsi %5, %8 : vector<4x256xi32>
    %c0_i32_4 = arith.constant 0 : i32
    %10 = vector.broadcast %c0_i32_4 : i32 to vector<4x256xi32>
    %11 = arith.cmpi ne, %9, %10 : vector<4x256xi32>
    %c0_i32_5 = arith.constant 0 : i32
    %12 = vector.broadcast %c0_i32_5 : i32 to vector<4x256xi32>
    %13 = arith.cmpi slt, %9, %12 : vector<4x256xi32>
    %c0_i32_6 = arith.constant 0 : i32
    %14 = arith.cmpi slt, %7, %c0_i32_6 : i32
    %15 = vector.broadcast %14 : i1 to vector<4x256xi1>
    %16 = vector.broadcast %15 : vector<4x256xi1> to vector<4x256xi1>
    %17 = arith.xori %13, %16 : vector<4x256xi1>
    %18 = arith.andi %17, %11 : vector<4x256xi1>
    %19 = vector.broadcast %7 : i32 to vector<4x256xi32>
    %20 = arith.addi %9, %19 : vector<4x256xi32>
    %21 = arith.select %18, %20, %9 : vector<4x256xi1>, vector<4x256xi32>
    %c0_7 = arith.constant 0 : index
    %c111 = arith.constant 111 : index
    %22 = vector.load %arg7[%c0_7, %c111] : memref<6x512xf32, #tpu.memory_space<vmem>>, vector<4x256xf32>
    %c0_8 = arith.constant 0 : index
    %23 = memref.load %arg1[%c0_8] : memref<27xf32, #tpu.memory_space<smem>>
    %24 = vector.broadcast %23 : f32 to vector<4x256xf32>
    %25 = arith.mulf %24, %22 : vector<4x256xf32>
    %c0_9 = arith.constant 0 : index
    %c127 = arith.constant 127 : index
    %26 = vector.load %arg7[%c0_9, %c127] : memref<6x512xf32, #tpu.memory_space<vmem>>, vector<4x256xf32>
    %c3 = arith.constant 3 : index
    %27 = memref.load %arg1[%c3] : memref<27xf32, #tpu.memory_space<smem>>
    %28 = vector.broadcast %27 : f32 to vector<4x256xf32>
    %29 = arith.mulf %28, %26 : vector<4x256xf32>
    %30 = arith.addf %25, %29 : vector<4x256xf32>
    %c0_10 = arith.constant 0 : index
    %c143 = arith.constant 143 : index
    %31 = vector.load %arg7[%c0_10, %c143] : memref<6x512xf32, #tpu.memory_space<vmem>>, vector<4x256xf32>
    %c6 = arith.constant 6 : index
    %32 = memref.load %arg1[%c6] : memref<27xf32, #tpu.memory_space<smem>>
    %33 = vector.broadcast %32 : f32 to vector<4x256xf32>
    %34 = arith.mulf %33, %31 : vector<4x256xf32>
    %35 = arith.addf %30, %34 : vector<4x256xf32>
    %c1_11 = arith.constant 1 : index
    %c111_12 = arith.constant 111 : index
    %36 = vector.load %arg7[%c1_11, %c111_12] : memref<6x512xf32, #tpu.memory_space<vmem>>, vector<4x256xf32>
    %c9 = arith.constant 9 : index
    %37 = memref.load %arg1[%c9] : memref<27xf32, #tpu.memory_space<smem>>
    %38 = vector.broadcast %37 : f32 to vector<4x256xf32>
    %39 = arith.mulf %38, %36 : vector<4x256xf32>
    %40 = arith.addf %35, %39 : vector<4x256xf32>
    %c1_13 = arith.constant 1 : index
    %c127_14 = arith.constant 127 : index
    %41 = vector.load %arg7[%c1_13, %c127_14] : memref<6x512xf32, #tpu.memory_space<vmem>>, vector<4x256xf32>
    %c12 = arith.constant 12 : index
    %42 = memref.load %arg1[%c12] : memref<27xf32, #tpu.memory_space<smem>>
    %43 = vector.broadcast %42 : f32 to vector<4x256xf32>
    %44 = arith.mulf %43, %41 : vector<4x256xf32>
    %45 = arith.addf %40, %44 : vector<4x256xf32>
    %c1_15 = arith.constant 1 : index
    %c143_16 = arith.constant 143 : index
    %46 = vector.load %arg7[%c1_15, %c143_16] : memref<6x512xf32, #tpu.memory_space<vmem>>, vector<4x256xf32>
    %c15 = arith.constant 15 : index
    %47 = memref.load %arg1[%c15] : memref<27xf32, #tpu.memory_space<smem>>
    %48 = vector.broadcast %47 : f32 to vector<4x256xf32>
    %49 = arith.mulf %48, %46 : vector<4x256xf32>
    %50 = arith.addf %45, %49 : vector<4x256xf32>
    %c2 = arith.constant 2 : index
    %c111_17 = arith.constant 111 : index
    %51 = vector.load %arg7[%c2, %c111_17] : memref<6x512xf32, #tpu.memory_space<vmem>>, vector<4x256xf32>
    %c18 = arith.constant 18 : index
    %52 = memref.load %arg1[%c18] : memref<27xf32, #tpu.memory_space<smem>>
    %53 = vector.broadcast %52 : f32 to vector<4x256xf32>
    %54 = arith.mulf %53, %51 : vector<4x256xf32>
    %55 = arith.addf %50, %54 : vector<4x256xf32>
    %c2_18 = arith.constant 2 : index
    %c127_19 = arith.constant 127 : index
    %56 = vector.load %arg7[%c2_18, %c127_19] : memref<6x512xf32, #tpu.memory_space<vmem>>, vector<4x256xf32>
    %c21 = arith.constant 21 : index
    %57 = memref.load %arg1[%c21] : memref<27xf32, #tpu.memory_space<smem>>
    %58 = vector.broadcast %57 : f32 to vector<4x256xf32>
    %59 = arith.mulf %58, %56 : vector<4x256xf32>
    %60 = arith.addf %55, %59 : vector<4x256xf32>
    %c2_20 = arith.constant 2 : index
    %c143_21 = arith.constant 143 : index
    %61 = vector.load %arg7[%c2_20, %c143_21] : memref<6x512xf32, #tpu.memory_space<vmem>>, vector<4x256xf32>
    %c24 = arith.constant 24 : index
    %62 = memref.load %arg1[%c24] : memref<27xf32, #tpu.memory_space<smem>>
    %63 = vector.broadcast %62 : f32 to vector<4x256xf32>
    %64 = arith.mulf %63, %61 : vector<4x256xf32>
    %65 = arith.addf %60, %64 : vector<4x256xf32>
    %c1_i32_22 = arith.constant 1 : i32
    %66 = vector.broadcast %c1_i32_22 : i32 to vector<4x256xi32>
    %67 = arith.cmpi sge, %21, %66 : vector<4x256xi32>
    %cst_23 = arith.constant 0.000000e+00 : f32
    %68 = vector.broadcast %cst_23 : f32 to vector<4x256xf32>
    %69 = arith.select %67, %65, %68 : vector<4x256xi1>, vector<4x256xf32>
    %c0_24 = arith.constant 0 : index
    %c112 = arith.constant 112 : index
    %70 = vector.load %arg7[%c0_24, %c112] : memref<6x512xf32, #tpu.memory_space<vmem>>, vector<4x256xf32>
    %c1_25 = arith.constant 1 : index
    %71 = memref.load %arg1[%c1_25] : memref<27xf32, #tpu.memory_space<smem>>
    %72 = vector.broadcast %71 : f32 to vector<4x256xf32>
    %73 = arith.mulf %72, %70 : vector<4x256xf32>
    %c0_26 = arith.constant 0 : index
    %c128_27 = arith.constant 128 : index
    %74 = vector.load %arg7[%c0_26, %c128_27] : memref<6x512xf32, #tpu.memory_space<vmem>>, vector<4x256xf32>
    %c4 = arith.constant 4 : index
    %75 = memref.load %arg1[%c4] : memref<27xf32, #tpu.memory_space<smem>>
    %76 = vector.broadcast %75 : f32 to vector<4x256xf32>
    %77 = arith.mulf %76, %74 : vector<4x256xf32>
    %78 = arith.addf %73, %77 : vector<4x256xf32>
    %c0_28 = arith.constant 0 : index
    %c144 = arith.constant 144 : index
    %79 = vector.load %arg7[%c0_28, %c144] : memref<6x512xf32, #tpu.memory_space<vmem>>, vector<4x256xf32>
    %c7 = arith.constant 7 : index
    %80 = memref.load %arg1[%c7] : memref<27xf32, #tpu.memory_space<smem>>
    %81 = vector.broadcast %80 : f32 to vector<4x256xf32>
    %82 = arith.mulf %81, %79 : vector<4x256xf32>
    %83 = arith.addf %78, %82 : vector<4x256xf32>
    %c1_29 = arith.constant 1 : index
    %c112_30 = arith.constant 112 : index
    %84 = vector.load %arg7[%c1_29, %c112_30] : memref<6x512xf32, #tpu.memory_space<vmem>>, vector<4x256xf32>
    %c10 = arith.constant 10 : index
    %85 = memref.load %arg1[%c10] : memref<27xf32, #tpu.memory_space<smem>>
    %86 = vector.broadcast %85 : f32 to vector<4x256xf32>
    %87 = arith.mulf %86, %84 : vector<4x256xf32>
    %88 = arith.addf %83, %87 : vector<4x256xf32>
    %c1_31 = arith.constant 1 : index
    %c128_32 = arith.constant 128 : index
    %89 = vector.load %arg7[%c1_31, %c128_32] : memref<6x512xf32, #tpu.memory_space<vmem>>, vector<4x256xf32>
    %c13 = arith.constant 13 : index
    %90 = memref.load %arg1[%c13] : memref<27xf32, #tpu.memory_space<smem>>
    %91 = vector.broadcast %90 : f32 to vector<4x256xf32>
    %92 = arith.mulf %91, %89 : vector<4x256xf32>
    %93 = arith.addf %88, %92 : vector<4x256xf32>
    %c1_33 = arith.constant 1 : index
    %c144_34 = arith.constant 144 : index
    %94 = vector.load %arg7[%c1_33, %c144_34] : memref<6x512xf32, #tpu.memory_space<vmem>>, vector<4x256xf32>
    %c16 = arith.constant 16 : index
    %95 = memref.load %arg1[%c16] : memref<27xf32, #tpu.memory_space<smem>>
    %96 = vector.broadcast %95 : f32 to vector<4x256xf32>
    %97 = arith.mulf %96, %94 : vector<4x256xf32>
    %98 = arith.addf %93, %97 : vector<4x256xf32>
    %c2_35 = arith.constant 2 : index
    %c112_36 = arith.constant 112 : index
    %99 = vector.load %arg7[%c2_35, %c112_36] : memref<6x512xf32, #tpu.memory_space<vmem>>, vector<4x256xf32>
    %c19 = arith.constant 19 : index
    %100 = memref.load %arg1[%c19] : memref<27xf32, #tpu.memory_space<smem>>
    %101 = vector.broadcast %100 : f32 to vector<4x256xf32>
    %102 = arith.mulf %101, %99 : vector<4x256xf32>
    %103 = arith.addf %98, %102 : vector<4x256xf32>
    %c2_37 = arith.constant 2 : index
    %c128_38 = arith.constant 128 : index
    %104 = vector.load %arg7[%c2_37, %c128_38] : memref<6x512xf32, #tpu.memory_space<vmem>>, vector<4x256xf32>
    %c22 = arith.constant 22 : index
    %105 = memref.load %arg1[%c22] : memref<27xf32, #tpu.memory_space<smem>>
    %106 = vector.broadcast %105 : f32 to vector<4x256xf32>
    %107 = arith.mulf %106, %104 : vector<4x256xf32>
    %108 = arith.addf %103, %107 : vector<4x256xf32>
    %c2_39 = arith.constant 2 : index
    %c144_40 = arith.constant 144 : index
    %109 = vector.load %arg7[%c2_39, %c144_40] : memref<6x512xf32, #tpu.memory_space<vmem>>, vector<4x256xf32>
    %c25 = arith.constant 25 : index
    %110 = memref.load %arg1[%c25] : memref<27xf32, #tpu.memory_space<smem>>
    %111 = vector.broadcast %110 : f32 to vector<4x256xf32>
    %112 = arith.mulf %111, %109 : vector<4x256xf32>
    %113 = arith.addf %108, %112 : vector<4x256xf32>
    %114 = arith.addf %69, %113 : vector<4x256xf32>
    %c0_41 = arith.constant 0 : index
    %c113 = arith.constant 113 : index
    %115 = vector.load %arg7[%c0_41, %c113] : memref<6x512xf32, #tpu.memory_space<vmem>>, vector<4x256xf32>
    %c2_42 = arith.constant 2 : index
    %116 = memref.load %arg1[%c2_42] : memref<27xf32, #tpu.memory_space<smem>>
    %117 = vector.broadcast %116 : f32 to vector<4x256xf32>
    %118 = arith.mulf %117, %115 : vector<4x256xf32>
    %c0_43 = arith.constant 0 : index
    %c129 = arith.constant 129 : index
    %119 = vector.load %arg7[%c0_43, %c129] : memref<6x512xf32, #tpu.memory_space<vmem>>, vector<4x256xf32>
    %c5 = arith.constant 5 : index
    %120 = memref.load %arg1[%c5] : memref<27xf32, #tpu.memory_space<smem>>
    %121 = vector.broadcast %120 : f32 to vector<4x256xf32>
    %122 = arith.mulf %121, %119 : vector<4x256xf32>
    %123 = arith.addf %118, %122 : vector<4x256xf32>
    %c0_44 = arith.constant 0 : index
    %c145 = arith.constant 145 : index
    %124 = vector.load %arg7[%c0_44, %c145] : memref<6x512xf32, #tpu.memory_space<vmem>>, vector<4x256xf32>
    %c8 = arith.constant 8 : index
    %125 = memref.load %arg1[%c8] : memref<27xf32, #tpu.memory_space<smem>>
    %126 = vector.broadcast %125 : f32 to vector<4x256xf32>
    %127 = arith.mulf %126, %124 : vector<4x256xf32>
    %128 = arith.addf %123, %127 : vector<4x256xf32>
    %c1_45 = arith.constant 1 : index
    %c113_46 = arith.constant 113 : index
    %129 = vector.load %arg7[%c1_45, %c113_46] : memref<6x512xf32, #tpu.memory_space<vmem>>, vector<4x256xf32>
    %c11 = arith.constant 11 : index
    %130 = memref.load %arg1[%c11] : memref<27xf32, #tpu.memory_space<smem>>
    %131 = vector.broadcast %130 : f32 to vector<4x256xf32>
    %132 = arith.mulf %131, %129 : vector<4x256xf32>
    %133 = arith.addf %128, %132 : vector<4x256xf32>
    %c1_47 = arith.constant 1 : index
    %c129_48 = arith.constant 129 : index
    %134 = vector.load %arg7[%c1_47, %c129_48] : memref<6x512xf32, #tpu.memory_space<vmem>>, vector<4x256xf32>
    %c14 = arith.constant 14 : index
    %135 = memref.load %arg1[%c14] : memref<27xf32, #tpu.memory_space<smem>>
    %136 = vector.broadcast %135 : f32 to vector<4x256xf32>
    %137 = arith.mulf %136, %134 : vector<4x256xf32>
    %138 = arith.addf %133, %137 : vector<4x256xf32>
    %c1_49 = arith.constant 1 : index
    %c145_50 = arith.constant 145 : index
    %139 = vector.load %arg7[%c1_49, %c145_50] : memref<6x512xf32, #tpu.memory_space<vmem>>, vector<4x256xf32>
    %c17 = arith.constant 17 : index
    %140 = memref.load %arg1[%c17] : memref<27xf32, #tpu.memory_space<smem>>
    %141 = vector.broadcast %140 : f32 to vector<4x256xf32>
    %142 = arith.mulf %141, %139 : vector<4x256xf32>
    %143 = arith.addf %138, %142 : vector<4x256xf32>
    %c2_51 = arith.constant 2 : index
    %c113_52 = arith.constant 113 : index
    %144 = vector.load %arg7[%c2_51, %c113_52] : memref<6x512xf32, #tpu.memory_space<vmem>>, vector<4x256xf32>
    %c20 = arith.constant 20 : index
    %145 = memref.load %arg1[%c20] : memref<27xf32, #tpu.memory_space<smem>>
    %146 = vector.broadcast %145 : f32 to vector<4x256xf32>
    %147 = arith.mulf %146, %144 : vector<4x256xf32>
    %148 = arith.addf %143, %147 : vector<4x256xf32>
    %c2_53 = arith.constant 2 : index
    %c129_54 = arith.constant 129 : index
    %149 = vector.load %arg7[%c2_53, %c129_54] : memref<6x512xf32, #tpu.memory_space<vmem>>, vector<4x256xf32>
    %c23 = arith.constant 23 : index
    %150 = memref.load %arg1[%c23] : memref<27xf32, #tpu.memory_space<smem>>
    %151 = vector.broadcast %150 : f32 to vector<4x256xf32>
    %152 = arith.mulf %151, %149 : vector<4x256xf32>
    %153 = arith.addf %148, %152 : vector<4x256xf32>
    %c2_55 = arith.constant 2 : index
    %c145_56 = arith.constant 145 : index
    %154 = vector.load %arg7[%c2_55, %c145_56] : memref<6x512xf32, #tpu.memory_space<vmem>>, vector<4x256xf32>
    %c26 = arith.constant 26 : index
    %155 = memref.load %arg1[%c26] : memref<27xf32, #tpu.memory_space<smem>>
    %156 = vector.broadcast %155 : f32 to vector<4x256xf32>
    %157 = arith.mulf %156, %154 : vector<4x256xf32>
    %158 = arith.addf %153, %157 : vector<4x256xf32>
    %c14_i32 = arith.constant 14 : i32
    %159 = vector.broadcast %c14_i32 : i32 to vector<4x256xi32>
    %160 = arith.cmpi sle, %21, %159 : vector<4x256xi32>
    %cst_57 = arith.constant 0.000000e+00 : f32
    %161 = vector.broadcast %cst_57 : f32 to vector<4x256xf32>
    %162 = arith.select %160, %158, %161 : vector<4x256xi1>, vector<4x256xf32>
    %163 = arith.addf %114, %162 : vector<4x256xf32>
    %c0_58 = arith.constant 0 : index
    %164 = memref.load %arg2[%c0_58] : memref<1xf32, #tpu.memory_space<smem>>
    %165 = vector.broadcast %164 : f32 to vector<4x256xf32>
    %166 = arith.addf %163, %165 : vector<4x256xf32>
    %cst_59 = arith.constant 0.000000e+00 : f32
    %167 = vector.broadcast %cst_59 : f32 to vector<4x256xf32>
    %168 = arith.subf %167, %166 : vector<4x256xf32>
    %169 = math.exp %168 : vector<4x256xf32>
    %cst_60 = arith.constant 1.000000e+00 : f32
    %170 = vector.broadcast %cst_60 : f32 to vector<4x256xf32>
    %171 = arith.addf %170, %169 : vector<4x256xf32>
    %172 = tpu.reciprocal %171 {approx = true} : vector<4x256xf32> -> vector<4x256xf32>
    %c0_61 = arith.constant 0 : index
    %173 = memref.load %arg3[%c0_61] : memref<1xf32, #tpu.memory_space<smem>>
    %174 = vector.broadcast %173 : f32 to vector<4x256xf32>
    %175 = arith.mulf %174, %172 : vector<4x256xf32>
    %c0_62 = arith.constant 0 : index
    %c0_63 = arith.constant 0 : index
    %c0_64 = arith.constant 0 : index
    %176 = vector.load %arg6[%c0_62, %c0_63, %c0_64] : memref<1x4x256xf32, #tpu.memory_space<vmem>>, vector<1x4x256xf32>
    %177 = vector.shape_cast %176 : vector<1x4x256xf32> to vector<4x256xf32>
    %178 = vector.shape_cast %175 : vector<4x256xf32> to vector<1x4x256xf32>
    tpu.vector_store %arg6[%c0_62, %c0_63, %c0_64], %178 {strides = array<i32>} : memref<1x4x256xf32, #tpu.memory_space<vmem>>, vector<1x4x256xf32>,
    %179 = arith.mulf %1, %175 : vector<4x256xf32>
    %180 = arith.addf %179, %1 : vector<4x256xf32>
    %c0_65 = arith.constant 0 : index
    %c0_66 = arith.constant 0 : index
    %c0_67 = arith.constant 0 : index
    %181 = vector.load %arg5[%c0_65, %c0_66, %c0_67] : memref<1x4x256xf32, #tpu.memory_space<vmem>>, vector<1x4x256xf32>
    %182 = vector.shape_cast %181 : vector<1x4x256xf32> to vector<4x256xf32>
    %183 = vector.shape_cast %180 : vector<4x256xf32> to vector<1x4x256xf32>
    tpu.vector_store %arg5[%c0_65, %c0_66, %c0_67], %183 {strides = array<i32>} : memref<1x4x256xf32, #tpu.memory_space<vmem>>, vector<1x4x256xf32>,
    return
  }
  func.func @transform_0(%arg0: i32) -> i32 {
    %c0_i32 = arith.constant 0 : i32
    %c0_i32_0 = arith.constant 0 : i32
    return %c0_i32 : i32
  }
  func.func @transform_1(%arg0: i32) -> i32 {
    %c0_i32 = arith.constant 0 : i32
    %c0_i32_0 = arith.constant 0 : i32
    return %c0_i32 : i32
  }
  func.func @transform_2(%arg0: i32) -> i32 {
    %c0_i32 = arith.constant 0 : i32
    %c0_i32_0 = arith.constant 0 : i32
    return %c0_i32 : i32
  }
  func.func @transform_3(%arg0: i32) -> (i32, i32, i32) {
    %c0_i32 = arith.constant 0 : i32
    %c0_i32_0 = arith.constant 0 : i32
    %c0_i32_1 = arith.constant 0 : i32
    return %arg0, %c0_i32, %c0_i32_0 : i32, i32, i32
  }
  func.func @transform_4(%arg0: i32) -> (i32, i32, i32) {
    %c0_i32 = arith.constant 0 : i32
    %c0_i32_0 = arith.constant 0 : i32
    %c0_i32_1 = arith.constant 0 : i32
    return %arg0, %c0_i32, %c0_i32_0 : i32, i32, i32
  }
  func.func @transform_5(%arg0: i32) -> (i32, i32, i32) {
    %c0_i32 = arith.constant 0 : i32
    %c0_i32_0 = arith.constant 0 : i32
    %c0_i32_1 = arith.constant 0 : i32
    return %arg0, %c0_i32, %c0_i32_0 : i32, i32, i32
  }
}

</mosaic_0001>

<llo_original>
// kernel: tpu_custom_call.1
$region0: #{tpu_custom_call.1}
  #allocation0 [shape = 'u32[]', space=smem, size = 0x4, offset = 0x4, fixed_abs, tag = 'smem constant byte address 0x4 - core index']
  #allocation1 [shape = 'u32[144,128]{1,0:T(1,128)}', space=vmem, size = 0x12000, scoped, tag = 'internal scratch']
  #allocation2 [shape = 'f32[6,512]{1,0:T(8,128)}', space=vmem, size = 0x4000, scoped, tag = 'scratch operand']
  #allocation3 [shape = 'f32[1]{0:T(128)S(6)}', space=smem, size = 0x200, scoped, tag = 'scoped memory for tpu_custom_call.1']
  #allocation4 [shape = 'f32[1]{0:T(128)S(6)}', space=smem, size = 0x200, scoped, tag = 'scoped memory for tpu_custom_call.1']
  %s0 = inlined_call_operand.vmem [shape: f32[27], index: 0, kind: input, shape index: {}]
  %s1 = inlined_call_operand.<no memory space> [shape: f32[1], index: 1, kind: input, shape index: {}]
  %s2 = inlined_call_operand.<no memory space> [shape: f32[1], index: 2, kind: input, shape index: {}]
  %s3 = inlined_call_operand.hbm [shape: f32[2,4,256], index: 3, kind: input, shape index: {}]
  %s4 = inlined_call_operand.hbm [shape: f32[2,4,256], index: 4, kind: output, shape index: {0}]
  %s5 = inlined_call_operand.hbm [shape: f32[2,4,256], index: 5, kind: output, shape index: {1}]
  %6 = xla_tuple %s4, %s5
  %s7 = sld [smem:[#allocation0]]
  $region65: #{tpu_custom_call.1} parent=0
    _
  %s9 = ssub.s32 1, %s7
  %s10 = scalar_select 0, %s9, %s7
  %11 = sst [smem:[#allocation3]] %s1
  %12 = sst [smem:[#allocation4]] %s2
  $region1: #{tpu_custom_call.1} parent=0
    #allocation5 [shape = 'u8[512]{0}', space=smem, size = 0x200, scoped, tag = 'input window, operand 0, single buffered']
    #allocation6 [shape = 's32[2]{0}', space=sflag, size = 0x8, scoped, tag = 'scoped memory for tpu_custom_call.1']
    #allocation7 [shape = 's32[2]{0}', space=sflag, size = 0x8, scoped, tag = 'scoped memory for tpu_custom_call.1']
    #allocation8 [shape = 's32[2]{0}', space=sflag, size = 0x8, scoped, tag = 'scoped memory for tpu_custom_call.1']
    #allocation9 [shape = 'u8[8192]{0}', space=vmem, size = 0x2000, scoped, tag = 'input window, operand 3']
    #allocation10 [shape = 'u8[8192]{0}', space=vmem, size = 0x2000, scoped, tag = 'output window, operand 0']
    #allocation11 [shape = 'u8[8192]{0}', space=vmem, size = 0x2000, scoped, tag = 'output window, operand 1']
    #allocation12 [shape = 's32[2]{0}', space=sflag, size = 0x8, scoped, tag = 'scoped memory for tpu_custom_call.1']
    %13 = vsyncpa [#allocation8], 0
    %14 = vsyncpa [#allocation6], 0
    %s15 = scalar_lea.sflag [#allocation6], 1
    %16 = vsyncpa %s15, 0
    %17 = vsyncpa [#allocation7], 0
    %s18 = scalar_lea.sflag [#allocation7], 1
    %19 = vsyncpa %s18, 0
    %20 = vsyncpa [#allocation12], 0
    %s21 = scalar_lea.sflag [#allocation12], 1
    %22 = vsyncpa %s21, 0
    loop: start=0, step=1, limit=4
    $region2: #{tpu_custom_call.1} parent=1 // loop_pre_header
      _
    $region3: #{tpu_custom_call.1} parent=1 // loop_header
      %s24 = sphi 0, %s28
      %p25 = scmp.ge.s32.totalorder %s24, 4
      %s32 = sphi 0, %s32
      %s34 = sphi 0, %s32
      %s35 = sphi 0, %s34
      %s49 = sphi 0, %s35
      %s53 = sphi 0, %s53
      %s55 = sphi 0, %s53
      %s56 = sphi 0, %s55
      %s70 = sphi 0, %s56
      %s74 = sphi 0, %s74
      %s76 = sphi 0, %s74
      %s77 = sphi 0, %s76
      %s91 = sphi 0, %s77
      %s97 = sphi 0, %s99
      %s100 = sphi 0, %s97
      %s101 = sphi 0, %s100
      %s117 = sphi 0, %s101
      %s123 = sphi 0, %s125
      %s126 = sphi 0, %s123
      %s127 = sphi 0, %s126
      %s143 = sphi 0, %s127
      %s149 = sphi 0, %s151
      %s152 = sphi 0, %s149
      %s153 = sphi 0, %s152
      %s169 = sphi 0, %s153
    $region4: #{tpu_custom_call.1} parent=1 // loop_header_branch
      %27 = sbr.rel (%p25) target = $region8
    $region5: #{tpu_custom_call.1} parent=1 // loop_body
      %s29 = ssub.s32 %s24, 1
      %s30 = ssub.s32 %s24, 2
      %s31 = sadd.s32 %s24, 1
      %s33 = sadd.s32 %s32, 1
      %p36 = scmp.eq.s32.totalorder %s24, 1
      %p37 = scmp.ne.s32.totalorder %s32, %s34
      %p38 = scmp.eq.s32.totalorder %s24, 0
      %p39 = por %p37, %p38
      %p40 = scmp.ne.s32.totalorder %s32, %s34
      %p41 = scmp.eq.s32.totalorder %s29, 1
      %p42 = por %p40, %p41
      %p43 = scmp.ne.s32.totalorder %s34, %s35
      %p44 = scmp.eq.s32.totalorder %s29, 0
      %p45 = por %p43, %p44
      %p46 = scmp.ne.s32.totalorder %s34, %s35
      %p47 = scmp.eq.s32.totalorder %s30, 1
      %p48 = por %p46, %p47
      %p50 = scmp.ne.s32.totalorder %s35, %s49
      %p51 = scmp.eq.s32.totalorder %s30, 0
      %p52 = por %p50, %p51
      %s54 = sadd.s32 %s53, 1
      %p57 = scmp.eq.s32.totalorder %s24, 1
      %p58 = scmp.ne.s32.totalorder %s53, %s55
      %p59 = scmp.eq.s32.totalorder %s24, 0
      %p60 = por %p58, %p59
      %p61 = scmp.ne.s32.totalorder %s53, %s55
      %p62 = scmp.eq.s32.totalorder %s29, 1
      %p63 = por %p61, %p62
      %p64 = scmp.ne.s32.totalorder %s55, %s56
      %p65 = scmp.eq.s32.totalorder %s29, 0
      %p66 = por %p64, %p65
      %p67 = scmp.ne.s32.totalorder %s55, %s56
      %p68 = scmp.eq.s32.totalorder %s30, 1
      %p69 = por %p67, %p68
      %p71 = scmp.ne.s32.totalorder %s56, %s70
      %p72 = scmp.eq.s32.totalorder %s30, 0
      %p73 = por %p71, %p72
      %s75 = sadd.s32 %s74, 1
      %p78 = scmp.eq.s32.totalorder %s24, 1
      %p79 = scmp.ne.s32.totalorder %s74, %s76
      %p80 = scmp.eq.s32.totalorder %s24, 0
      %p81 = por %p79, %p80
      %p82 = scmp.ne.s32.totalorder %s74, %s76
      %p83 = scmp.eq.s32.totalorder %s29, 1
      %p84 = por %p82, %p83
      %p85 = scmp.ne.s32.totalorder %s76, %s77
      %p86 = scmp.eq.s32.totalorder %s29, 0
      %p87 = por %p85, %p86
      %p88 = scmp.ne.s32.totalorder %s76, %s77
      %p89 = scmp.eq.s32.totalorder %s30, 1
      %p90 = por %p88, %p89
      %p92 = scmp.ne.s32.totalorder %s77, %s91
      %p93 = scmp.eq.s32.totalorder %s30, 0
      %p94 = por %p92, %p93
      %s95 = ssub.s32 %s24, %s31
      %p96 = scmp.eq.s32.totalorder %s95, 0
      %s98 = sadd.s32 %s97, 1
      %s99 = scalar_select %p96, %s97, %s98
      %p102 = pneg %p96
      %p103 = scmp.eq.s32.totalorder %s24, 1
      %p104 = por %p102, %p103
      %p105 = scmp.ne.s32.totalorder %s97, %s100
      %p106 = scmp.eq.s32.totalorder %s24, 0
      %p107 = por %p105, %p106
      %p108 = scmp.ne.s32.totalorder %s97, %s100
      %p109 = scmp.eq.s32.totalorder %s29, 1
      %p110 = por %p108, %p109
      %p111 = scmp.ne.s32.totalorder %s100, %s101
      %p112 = scmp.eq.s32.totalorder %s29, 0
      %p113 = por %p111, %p112
      %p114 = scmp.ne.s32.totalorder %s100, %s101
      %p115 = scmp.eq.s32.totalorder %s30, 1
      %p116 = por %p114, %p115
      %p118 = scmp.ne.s32.totalorder %s101, %s117
      %p119 = scmp.eq.s32.totalorder %s30, 0
      %p120 = por %p118, %p119
      %s121 = ssub.s32 %s24, %s31
      %p122 = scmp.eq.s32.totalorder %s121, 0
      %s124 = sadd.s32 %s123, 1
      %s125 = scalar_select %p122, %s123, %s124
      %p128 = pneg %p122
      %p129 = scmp.eq.s32.totalorder %s24, 1
      %p130 = por %p128, %p129
      %p131 = scmp.ne.s32.totalorder %s123, %s126
      %p132 = scmp.eq.s32.totalorder %s24, 0
      %p133 = por %p131, %p132
      %p134 = scmp.ne.s32.totalorder %s123, %s126
      %p135 = scmp.eq.s32.totalorder %s29, 1
      %p136 = por %p134, %p135
      %p137 = scmp.ne.s32.totalorder %s126, %s127
      %p138 = scmp.eq.s32.totalorder %s29, 0
      %p139 = por %p137, %p138
      %p140 = scmp.ne.s32.totalorder %s126, %s127
      %p141 = scmp.eq.s32.totalorder %s30, 1
      %p142 = por %p140, %p141
      %p144 = scmp.ne.s32.totalorder %s127, %s143
      %p145 = scmp.eq.s32.totalorder %s30, 0
      %p146 = por %p144, %p145
      %s147 = ssub.s32 %s24, %s31
      %p148 = scmp.eq.s32.totalorder %s147, 0
      %s150 = sadd.s32 %s149, 1
      %s151 = scalar_select %p148, %s149, %s150
      %p154 = pneg %p148
      %p155 = scmp.eq.s32.totalorder %s24, 1
      %p156 = por %p154, %p155
      %p157 = scmp.ne.s32.totalorder %s149, %s152
      %p158 = scmp.eq.s32.totalorder %s24, 0
      %p159 = por %p157, %p158
      %p160 = scmp.ne.s32.totalorder %s149, %s152
      %p161 = scmp.eq.s32.totalorder %s29, 1
      %p162 = por %p160, %p161
      %p163 = scmp.ne.s32.totalorder %s152, %s153
      %p164 = scmp.eq.s32.totalorder %s29, 0
      %p165 = por %p163, %p164
      %p166 = scmp.ne.s32.totalorder %s152, %s153
      %p167 = scmp.eq.s32.totalorder %s30, 1
      %p168 = por %p166, %p167
      %p170 = scmp.ne.s32.totalorder %s153, %s169
      %p171 = scmp.eq.s32.totalorder %s30, 0
      %p172 = por %p170, %p171
      %p173 = scmp.le.s32.totalorder 1, %s24
      %p174 = scmp.lt.s32.totalorder %s24, 3
      %p175 = pnand %p173, %p174
      %p176 = pneg %p175
      // Predicated region
      $region9: #{tpu_custom_call.1} parent=5 // pred_check
        _
      $region10: #{tpu_custom_call.1} parent=5 // pred_check_branch
        %178 = sbr.rel (%p175) target = $region12
      $region11: #{tpu_custom_call.1} parent=5 // pred_region
        %s179 = ssub.s32 %s24, 1
        // Predicated region
        $region13: #{tpu_custom_call.1} parent=11 // pred_check
          %p180 = pneg %p45
        $region14: #{tpu_custom_call.1} parent=11 // pred_check_branch
          %182 = sbr.rel (%p180) target = $region16
        $region15: #{tpu_custom_call.1} parent=11 // pred_region
          %s184 = ssub.s32 16, 16
          %185 = vsyncadd [#allocation8], %s184
          %s187 = sshll.u32 %s0, 4
          %s188 = int_to_ptr.vmem [resolvable:$true] %s187
          %190 = dma.vmem_to_smem %s188, 16, [#allocation5], [#allocation8]
        $region16: #{tpu_custom_call.1} parent=11 // pred_fallthru
          _
        // Predicated region
        $region17: #{tpu_custom_call.1} parent=11 // pred_check
          %p191 = pneg %p66
        $region18: #{tpu_custom_call.1} parent=11 // pred_check_branch
          %193 = sbr.rel (%p191) target = $region20
        $region19: #{tpu_custom_call.1} parent=11 // pred_region
          _
        $region20: #{tpu_custom_call.1} parent=11 // pred_fallthru
          _
        // Predicated region
        $region21: #{tpu_custom_call.1} parent=11 // pred_check
          %p194 = pneg %p87
        $region22: #{tpu_custom_call.1} parent=11 // pred_check_branch
          %196 = sbr.rel (%p194) target = $region24
        $region23: #{tpu_custom_call.1} parent=11 // pred_region
          _
        $region24: #{tpu_custom_call.1} parent=11 // pred_fallthru
          _
      $region12: #{tpu_custom_call.1} parent=5 // pred_fallthru
        _
      %p197 = scmp.lt.s32.totalorder %s24, 2
      // Predicated region
      $region25: #{tpu_custom_call.1} parent=5 // pred_check
        %p198 = pneg %p197
      $region26: #{tpu_custom_call.1} parent=5 // pred_check_branch
        %200 = sbr.rel (%p198) target = $region28
      $region27: #{tpu_custom_call.1} parent=5 // pred_region
        // Predicated region
        $region29: #{tpu_custom_call.1} parent=27 // pred_check
          %p201 = pneg %p107
        $region30: #{tpu_custom_call.1} parent=27 // pred_check_branch
          %203 = sbr.rel (%p201) target = $region32
        $region31: #{tpu_custom_call.1} parent=27 // pred_region
          %s204 = sand.u32 %s97, 1
          %s205 = scalar_lea.sflag [#allocation6], %s204
          %s206 = sand.u32 %s97, 1
          %s207 = smul.addr %s206, 8
          %s208 = scalar_lea.vmem [#allocation9], %s207
          %s210 = ssub.s32 128, 128
          %211 = vsyncadd %s205, %s210
          %s212 = smul.addr %s24, 2
          %s213 = smul.addr %s212, 64
          %s214 = scalar_lea.hbm %s3, %s213
          %s216 = sshll.u32 %s208, 4
          %s217 = int_to_ptr.vmem [resolvable:$true] %s216
          %219 = dma.hbm_to_vmem [thread:$0]  %s214, 128, %s217, %s205
        $region32: #{tpu_custom_call.1} parent=27 // pred_fallthru
          _
      $region28: #{tpu_custom_call.1} parent=5 // pred_fallthru
        _
      %p220 = scmp.le.s32.totalorder 1, %s24
      %p221 = scmp.lt.s32.totalorder %s24, 3
      %p222 = pnand %p220, %p221
      %p223 = pneg %p222
      // Predicated region
      $region33: #{tpu_custom_call.1} parent=5 // pred_check
        _
      $region34: #{tpu_custom_call.1} parent=5 // pred_check_branch
        %225 = sbr.rel (%p222) target = $region36
      $region35: #{tpu_custom_call.1} parent=5 // pred_region
        %s226 = ssub.s32 %s24, 1
        // Predicated region
        $region37: #{tpu_custom_call.1} parent=35 // pred_check
          %p227 = pneg %p45
        $region38: #{tpu_custom_call.1} parent=35 // pred_check_branch
          %229 = sbr.rel (%p227) target = $region40
        $region39: #{tpu_custom_call.1} parent=35 // pred_region
          %230 = dma.done [#allocation8], 16
        $region40: #{tpu_custom_call.1} parent=35 // pred_fallthru
          _
        %s231 = sand.u32 %s100, 1
        %s232 = scalar_lea.sflag [#allocation6], %s231
        %s233 = sand.u32 %s100, 1
        %s234 = smul.addr %s233, 8
        %s235 = scalar_lea.vmem [#allocation9], %s234
        // Predicated region
        $region41: #{tpu_custom_call.1} parent=35 // pred_check
          %p236 = pneg %p113
        $region42: #{tpu_custom_call.1} parent=35 // pred_check_branch
          %238 = sbr.rel (%p236) target = $region44
        $region43: #{tpu_custom_call.1} parent=35 // pred_region
          %239 = dma.done %s232, 128
        $region44: #{tpu_custom_call.1} parent=35 // pred_fallthru
          _
        %240 = sfence
        %p241 = pneg %p45
        %p242 = pneg %p42
        %p243 = pneg %p66
        %p244 = pneg %p63
        %p245 = pneg %p87
        %p246 = pneg %p84
        %s247 = sand.u32 %s100, 1
        %s248 = scalar_lea.sflag [#allocation6], %s247
        %s249 = sand.u32 %s100, 1
        %s250 = smul.addr %s249, 8
        %s251 = scalar_lea.vmem [#allocation9], %s250
        %p252 = pneg %p113
        %p253 = pneg %p110
        %p254 = pneg %p139
        %p255 = pneg %p136
        %s256 = sand.u32 %s126, 1
        %s257 = scalar_lea.sflag [#allocation7], %s256
        %s258 = sand.u32 %s126, 1
        %s259 = smul.addr %s258, 8
        %s260 = scalar_lea.vmem [#allocation10], %s259
        %p261 = pneg %p165
        %p262 = pneg %p162
        %s263 = sand.u32 %s152, 1
        %s264 = scalar_lea.sflag [#allocation12], %s263
        %s265 = sand.u32 %s152, 1
        %s266 = smul.addr %s265, 8
        %s267 = scalar_lea.vmem [#allocation11], %s266
        %v268 = vld [vmem:[%s235] sm:$0xff]
        %269 = vst [vmem:[#allocation2] sm:$0x3f] 0.0
        %270 = vst [vmem:[#allocation2 + $0x8] sm:$0x3f] 0.0
        %271 = vst [vmem:[#allocation2 + $0x10] sm:$0x3f] 0.0
        %272 = vst [vmem:[#allocation2 + $0x18] sm:$0x3f] 0.0
        %v274 = vcombine.high %v268, %v268
        %v275 = vrot.slane %v268, 7
        %v276 = vrot.slane %v274, 7
        %279 = vst [vmem:[#allocation2 + $0x8] sm:$0x1e] %v275
        %280 = vst [vmem:[#allocation2 + $0x10] sm:$0x1e] %v276
        %v281 = vlaneseq
        %v282 = vand.u32 %v281, 127
        %v283 = vadd.s32 %v282, 128
        %vm284 = vcmp.lt.s32.totalorder %v282, 0
        %v285 = vsub.s32 0, %v282
        %v286 = vsel %vm284, %v285, %v282
        %v287 = vshrl.u32 %v286, 4
        %v288 = vand.u32 %v286, 15
        %v289 = vsub.s32 0, %v288
        %v290 = vsel %vm284, %v289, %v288
        %vm291 = vcmp.lt.s32.totalorder %v283, 0
        %v292 = vsub.s32 0, %v283
        %v293 = vsel %vm291, %v292, %v283
        %v294 = vshrl.u32 %v293, 4
        %v295 = vand.u32 %v293, 15
        %v296 = vsub.s32 0, %v295
        %v297 = vsel %vm291, %v296, %v295
        %vm298 = vcmp.ne.s32.totalorder %v290, 0
        %vm299 = vcmp.ne.s32.totalorder %v297, 0
        %vm300 = vcmp.lt.s32.totalorder %v290, 0
        %vm301 = vcmp.lt.s32.totalorder %v297, 0
        %vm302 = vmand %vm300, %vm298
        %vm303 = vmand %vm301, %vm299
        %v304 = vadd.s32 %v290, 16
        %v305 = vadd.s32 %v297, 16
        %v306 = vsel %vm302, %v304, %v290
        %v307 = vsel %vm303, %v305, %v297
        %v308 = vld [vmem:[#allocation2] sm:$0xf]
        %v309 = vld [vmem:[#allocation2 + $0x8] sm:$0xf]
        %v310 = vld [vmem:[#allocation2 + $0x10] sm:$0xf]
        %s311 = sld [smem:[#allocation5]]
        %v312 = vstv %s311
        %v313 = vmul.f32 %v312, %v308
        %v314 = vmul.f32 %v312, %v309
        %v315 = vmul.f32 %v312, %v310
        %s316 = sld [smem:[#allocation5 + $0x3]]
        %v317 = vstv %s316
        %v318 = vmul.f32 %v317, %v308
        %v319 = vmul.f32 %v317, %v309
        %v320 = vmul.f32 %v317, %v310
        %324 = vrot.lane.b32.xlu0 %v318, 112
        %v325 = vpop.permute.xlu0 %324
        %326 = vrot.lane.b32.xlu0 %v319, 112
        %v327 = vpop.permute.xlu0 %326
        %328 = vrot.lane.b32.xlu0 %v320, 112
        %v329 = vpop.permute.xlu0 %328
        %vm330 = vcmask 916480
        %v331 = vsel %vm330, %v325, %v327
        %v332 = vsel %vm330, %v327, %v329
        %v336 = vadd.f32 %v313, %v331
        %v337 = vadd.f32 %v314, %v332
        %v338 = vadd.f32 %v315, %v329
        %v339 = vld [vmem:[#allocation2 + $0x8] sm:$0xf]
        %v340 = vld [vmem:[#allocation2 + $0x10] sm:$0xf]
        %v341 = vld [vmem:[#allocation2 + $0x18] sm:$0xf]
        %s342 = sld [smem:[#allocation5 + $0x6]]
        %v343 = vstv %s342
        %v344 = vmul.f32 %v343, %v339
        %v345 = vmul.f32 %v343, %v340
        %v346 = vmul.f32 %v343, %v341
        %350 = vrot.lane.b32.xlu0 %v344, 96
        %v351 = vpop.permute.xlu0 %350
        %352 = vrot.lane.b32.xlu0 %v345, 96
        %v353 = vpop.permute.xlu0 %352
        %354 = vrot.lane.b32.xlu0 %v346, 96
        %v355 = vpop.permute.xlu0 %354
        %vm356 = vcmask 785408
        %v357 = vsel %vm356, %v351, %v353
        %v358 = vsel %vm356, %v353, %v355
        %v362 = vadd.f32 %v336, %v351
        %v363 = vadd.f32 %v337, %v357
        %v364 = vadd.f32 %v338, %v358
        %v365 = vld [vmem:[#allocation2] sm:$0x1e]
        %v366 = vld [vmem:[#allocation2 + $0x8] sm:$0x1e]
        %v367 = vld [vmem:[#allocation2 + $0x10] sm:$0x1e]
        %s368 = sld [smem:[#allocation5 + $0x9]]
        %v369 = vstv %s368
        %v370 = vmul.f32 %v369, %v365
        %v371 = vmul.f32 %v369, %v366
        %v372 = vmul.f32 %v369, %v367
        %v376 = vrot.slane %v370, 1
        %v377 = vrot.slane %v371, 1
        %v378 = vrot.slane %v372, 1
        %v382 = vadd.f32 %v362, %v376
        %v383 = vadd.f32 %v363, %v377
        %v384 = vadd.f32 %v364, %v378
        %s385 = sld [smem:[#allocation5 + $0xc]]
        %v386 = vstv %s385
        %v387 = vmul.f32 %v386, %v365
        %v388 = vmul.f32 %v386, %v366
        %v389 = vmul.f32 %v386, %v367
        %v393 = vrot.slane %v387, 1
        %v394 = vrot.slane %v388, 1
        %v395 = vrot.slane %v389, 1
        %396 = vrot.lane.b32.xlu0 %v393, 112
        %v397 = vpop.permute.xlu0 %396
        %398 = vrot.lane.b32.xlu0 %v394, 112
        %v399 = vpop.permute.xlu0 %398
        %400 = vrot.lane.b32.xlu0 %v395, 112
        %v401 = vpop.permute.xlu0 %400
        %v402 = vsel %vm330, %v397, %v399
        %v403 = vsel %vm330, %v399, %v401
        %v407 = vadd.f32 %v382, %v402
        %v408 = vadd.f32 %v383, %v403
        %v409 = vadd.f32 %v384, %v401
        %v410 = vld [vmem:[#allocation2 + $0x8] sm:$0x1e]
        %v411 = vld [vmem:[#allocation2 + $0x10] sm:$0x1e]
        %v412 = vld [vmem:[#allocation2 + $0x18] sm:$0x1e]
        %s413 = sld [smem:[#allocation5 + $0xf]]
        %v414 = vstv %s413
        %v415 = vmul.f32 %v414, %v410
        %v416 = vmul.f32 %v414, %v411
        %v417 = vmul.f32 %v414, %v412
        %v421 = vrot.slane %v415, 1
        %v422 = vrot.slane %v416, 1
        %v423 = vrot.slane %v417, 1
        %424 = vrot.lane.b32.xlu0 %v421, 96
        %v425 = vpop.permute.xlu0 %424
        %426 = vrot.lane.b32.xlu0 %v422, 96
        %v427 = vpop.permute.xlu0 %426
        %428 = vrot.lane.b32.xlu0 %v423, 96
        %v429 = vpop.permute.xlu0 %428
        %v430 = vsel %vm356, %v425, %v427
        %v431 = vsel %vm356, %v427, %v429
        %v435 = vadd.f32 %v407, %v425
        %v436 = vadd.f32 %v408, %v430
        %v437 = vadd.f32 %v409, %v431
        %v438 = vld [vmem:[#allocation2] sm:$0x3c]
        %v439 = vld [vmem:[#allocation2 + $0x8] sm:$0x3c]
        %v440 = vld [vmem:[#allocation2 + $0x10] sm:$0x3c]
        %s441 = sld [smem:[#allocation5 + $0x12]]
        %v442 = vstv %s441
        %v443 = vmul.f32 %v442, %v438
        %v444 = vmul.f32 %v442, %v439
        %v445 = vmul.f32 %v442, %v440
        %v449 = vrot.slane %v443, 2
        %v450 = vrot.slane %v444, 2
        %v451 = vrot.slane %v445, 2
        %v455 = vadd.f32 %v435, %v449
        %v456 = vadd.f32 %v436, %v450
        %v457 = vadd.f32 %v437, %v451
        %s458 = sld [smem:[#allocation5 + $0x15]]
        %v459 = vstv %s458
        %v460 = vmul.f32 %v459, %v438
        %v461 = vmul.f32 %v459, %v439
        %v462 = vmul.f32 %v459, %v440
        %v466 = vrot.slane %v460, 2
        %v467 = vrot.slane %v461, 2
        %v468 = vrot.slane %v462, 2
        %469 = vrot.lane.b32.xlu0 %v466, 112
        %v470 = vpop.permute.xlu0 %469
        %471 = vrot.lane.b32.xlu0 %v467, 112
        %v472 = vpop.permute.xlu0 %471
        %473 = vrot.lane.b32.xlu0 %v468, 112
        %v474 = vpop.permute.xlu0 %473
        %v475 = vsel %vm330, %v470, %v472
        %v476 = vsel %vm330, %v472, %v474
        %v480 = vadd.f32 %v455, %v475
        %v481 = vadd.f32 %v456, %v476
        %v482 = vadd.f32 %v457, %v474
        %v483 = vld [vmem:[#allocation2 + $0x8] sm:$0x3c]
        %v484 = vld [vmem:[#allocation2 + $0x10] sm:$0x3c]
        %v485 = vld [vmem:[#allocation2 + $0x18] sm:$0x3c]
        %s486 = sld [smem:[#allocation5 + $0x18]]
        %v487 = vstv %s486
        %v488 = vmul.f32 %v487, %v483
        %v489 = vmul.f32 %v487, %v484
        %v490 = vmul.f32 %v487, %v485
        %v494 = vrot.slane %v488, 2
        %v495 = vrot.slane %v489, 2
        %v496 = vrot.slane %v490, 2
        %497 = vrot.lane.b32.xlu0 %v494, 96
        %v498 = vpop.permute.xlu0 %497
        %499 = vrot.lane.b32.xlu0 %v495, 96
        %v500 = vpop.permute.xlu0 %499
        %501 = vrot.lane.b32.xlu0 %v496, 96
        %v502 = vpop.permute.xlu0 %501
        %v503 = vsel %vm356, %v498, %v500
        %v504 = vsel %vm356, %v500, %v502
        %v508 = vadd.f32 %v480, %v498
        %v509 = vadd.f32 %v481, %v503
        %v510 = vadd.f32 %v482, %v504
        %vm511 = vcmp.ge.s32.totalorder %v306, 1
        %vm512 = vcmp.ge.s32.totalorder %v307, 1
        %516 = vrot.lane.b32.xlu0 %v508, 17
        %v517 = vpop.permute.xlu0 %516
        %518 = vrot.lane.b32.xlu0 %v509, 17
        %v519 = vpop.permute.xlu0 %518
        %520 = vrot.lane.b32.xlu0 %v510, 17
        %v521 = vpop.permute.xlu0 %520
        %vm522 = vcmask 138240
        %v523 = vsel %vm522, %v517, %v519
        %v524 = vsel %vm522, %v519, %v521
        %v527 = vsel %vm511, %v523, 0.0
        %v528 = vsel %vm512, %v524, 0.0
        %s529 = sld [smem:[#allocation5 + $0x1]]
        %v530 = vstv %s529
        %v531 = vmul.f32 %v530, %v308
        %v532 = vmul.f32 %v530, %v309
        %v533 = vmul.f32 %v530, %v310
        %s534 = sld [smem:[#allocation5 + $0x4]]
        %v535 = vstv %s534
        %v536 = vmul.f32 %v535, %v309
        %v537 = vmul.f32 %v535, %v310
        %540 = vrot.lane.b32.xlu0 %v536, 112
        %v541 = vpop.permute.xlu0 %540
        %542 = vrot.lane.b32.xlu0 %v537, 112
        %v543 = vpop.permute.xlu0 %542
        %v544 = vsel %vm330, %v541, %v543
        %v548 = vadd.f32 %v531, %v541
        %v549 = vadd.f32 %v532, %v544
        %v550 = vadd.f32 %v533, %v543
        %s551 = sld [smem:[#allocation5 + $0x7]]
        %v552 = vstv %s551
        %v553 = vmul.f32 %v552, %v339
        %v554 = vmul.f32 %v552, %v340
        %v555 = vmul.f32 %v552, %v341
        %559 = vrot.lane.b32.xlu0 %v553, 96
        %v560 = vpop.permute.xlu0 %559
        %561 = vrot.lane.b32.xlu0 %v554, 96
        %v562 = vpop.permute.xlu0 %561
        %563 = vrot.lane.b32.xlu0 %v555, 96
        %v564 = vpop.permute.xlu0 %563
        %v565 = vsel %vm356, %v560, %v562
        %v566 = vsel %vm356, %v562, %v564
        %v570 = vadd.f32 %v548, %v560
        %v571 = vadd.f32 %v549, %v565
        %v572 = vadd.f32 %v550, %v566
        %s573 = sld [smem:[#allocation5 + $0xa]]
        %v574 = vstv %s573
        %v575 = vmul.f32 %v574, %v365
        %v576 = vmul.f32 %v574, %v366
        %v577 = vmul.f32 %v574, %v367
        %v581 = vrot.slane %v575, 1
        %v582 = vrot.slane %v576, 1
        %v583 = vrot.slane %v577, 1
        %v587 = vadd.f32 %v570, %v581
        %v588 = vadd.f32 %v571, %v582
        %v589 = vadd.f32 %v572, %v583
        %s590 = sld [smem:[#allocation5 + $0xd]]
        %v591 = vstv %s590
        %v592 = vmul.f32 %v591, %v366
        %v593 = vmul.f32 %v591, %v367
        %v596 = vrot.slane %v592, 1
        %v597 = vrot.slane %v593, 1
        %598 = vrot.lane.b32.xlu0 %v596, 112
        %v599 = vpop.permute.xlu0 %598
        %600 = vrot.lane.b32.xlu0 %v597, 112
        %v601 = vpop.permute.xlu0 %600
        %v602 = vsel %vm330, %v599, %v601
        %v606 = vadd.f32 %v587, %v599
        %v607 = vadd.f32 %v588, %v602
        %v608 = vadd.f32 %v589, %v601
        %s609 = sld [smem:[#allocation5 + $0x10]]
        %v610 = vstv %s609
        %v611 = vmul.f32 %v610, %v410
        %v612 = vmul.f32 %v610, %v411
        %v613 = vmul.f32 %v610, %v412
        %v617 = vrot.slane %v611, 1
        %v618 = vrot.slane %v612, 1
        %v619 = vrot.slane %v613, 1
        %620 = vrot.lane.b32.xlu0 %v617, 96
        %v621 = vpop.permute.xlu0 %620
        %622 = vrot.lane.b32.xlu0 %v618, 96
        %v623 = vpop.permute.xlu0 %622
        %624 = vrot.lane.b32.xlu0 %v619, 96
        %v625 = vpop.permute.xlu0 %624
        %v626 = vsel %vm356, %v621, %v623
        %v627 = vsel %vm356, %v623, %v625
        %v631 = vadd.f32 %v606, %v621
        %v632 = vadd.f32 %v607, %v626
        %v633 = vadd.f32 %v608, %v627
        %s634 = sld [smem:[#allocation5 + $0x13]]
        %v635 = vstv %s634
        %v636 = vmul.f32 %v635, %v438
        %v637 = vmul.f32 %v635, %v439
        %v638 = vmul.f32 %v635, %v440
        %v642 = vrot.slane %v636, 2
        %v643 = vrot.slane %v637, 2
        %v644 = vrot.slane %v638, 2
        %v648 = vadd.f32 %v631, %v642
        %v649 = vadd.f32 %v632, %v643
        %v650 = vadd.f32 %v633, %v644
        %s651 = sld [smem:[#allocation5 + $0x16]]
        %v652 = vstv %s651
        %v653 = vmul.f32 %v652, %v439
        %v654 = vmul.f32 %v652, %v440
        %v657 = vrot.slane %v653, 2
        %v658 = vrot.slane %v654, 2
        %659 = vrot.lane.b32.xlu0 %v657, 112
        %v660 = vpop.permute.xlu0 %659
        %661 = vrot.lane.b32.xlu0 %v658, 112
        %v662 = vpop.permute.xlu0 %661
        %v663 = vsel %vm330, %v660, %v662
        %v667 = vadd.f32 %v648, %v660
        %v668 = vadd.f32 %v649, %v663
        %v669 = vadd.f32 %v650, %v662
        %s670 = sld [smem:[#allocation5 + $0x19]]
        %v671 = vstv %s670
        %v672 = vmul.f32 %v671, %v483
        %v673 = vmul.f32 %v671, %v484
        %v674 = vmul.f32 %v671, %v485
        %v678 = vrot.slane %v672, 2
        %v679 = vrot.slane %v673, 2
        %v680 = vrot.slane %v674, 2
        %681 = vrot.lane.b32.xlu0 %v678, 96
        %v682 = vpop.permute.xlu0 %681
        %683 = vrot.lane.b32.xlu0 %v679, 96
        %v684 = vpop.permute.xlu0 %683
        %685 = vrot.lane.b32.xlu0 %v680, 96
        %v686 = vpop.permute.xlu0 %685
        %v687 = vsel %vm356, %v682, %v684
        %v688 = vsel %vm356, %v684, %v686
        %v692 = vadd.f32 %v667, %v682
        %v693 = vadd.f32 %v668, %v687
        %v694 = vadd.f32 %v669, %v688
        %698 = vrot.lane.b32.xlu0 %v692, 16
        %v699 = vpop.permute.xlu0 %698
        %700 = vrot.lane.b32.xlu0 %v693, 16
        %v701 = vpop.permute.xlu0 %700
        %702 = vrot.lane.b32.xlu0 %v694, 16
        %v703 = vpop.permute.xlu0 %702
        %vm704 = vcmask 130048
        %v705 = vsel %vm704, %v699, %v701
        %v706 = vsel %vm704, %v701, %v703
        %v709 = vadd.f32 %v527, %v705
        %v710 = vadd.f32 %v528, %v706
        %s711 = sld [smem:[#allocation5 + $0x2]]
        %v712 = vstv %s711
        %v713 = vmul.f32 %v712, %v308
        %v714 = vmul.f32 %v712, %v309
        %v715 = vmul.f32 %v712, %v310
        %s716 = sld [smem:[#allocation5 + $0x5]]
        %v717 = vstv %s716
        %v718 = vmul.f32 %v717, %v339
        %v719 = vmul.f32 %v717, %v340
        %v720 = vmul.f32 %v717, %v341
        %724 = vrot.lane.b32.xlu0 %v718, 112
        %v725 = vpop.permute.xlu0 %724
        %726 = vrot.lane.b32.xlu0 %v719, 112
        %v727 = vpop.permute.xlu0 %726
        %728 = vrot.lane.b32.xlu0 %v720, 112
        %v729 = vpop.permute.xlu0 %728
        %v730 = vsel %vm330, %v725, %v727
        %v731 = vsel %vm330, %v727, %v729
        %v735 = vadd.f32 %v713, %v725
        %v736 = vadd.f32 %v714, %v730
        %v737 = vadd.f32 %v715, %v731
        %s738 = sld [smem:[#allocation5 + $0x8]]
        %v739 = vstv %s738
        %v740 = vmul.f32 %v739, %v339
        %v741 = vmul.f32 %v739, %v340
        %v742 = vmul.f32 %v739, %v341
        %746 = vrot.lane.b32.xlu0 %v740, 96
        %v747 = vpop.permute.xlu0 %746
        %748 = vrot.lane.b32.xlu0 %v741, 96
        %v749 = vpop.permute.xlu0 %748
        %750 = vrot.lane.b32.xlu0 %v742, 96
        %v751 = vpop.permute.xlu0 %750
        %v752 = vsel %vm356, %v747, %v749
        %v753 = vsel %vm356, %v749, %v751
        %v757 = vadd.f32 %v735, %v747
        %v758 = vadd.f32 %v736, %v752
        %v759 = vadd.f32 %v737, %v753
        %s760 = sld [smem:[#allocation5 + $0xb]]
        %v761 = vstv %s760
        %v762 = vmul.f32 %v761, %v365
        %v763 = vmul.f32 %v761, %v366
        %v764 = vmul.f32 %v761, %v367
        %v768 = vrot.slane %v762, 1
        %v769 = vrot.slane %v763, 1
        %v770 = vrot.slane %v764, 1
        %v774 = vadd.f32 %v757, %v768
        %v775 = vadd.f32 %v758, %v769
        %v776 = vadd.f32 %v759, %v770
        %s777 = sld [smem:[#allocation5 + $0xe]]
        %v778 = vstv %s777
        %v779 = vmul.f32 %v778, %v410
        %v780 = vmul.f32 %v778, %v411
        %v781 = vmul.f32 %v778, %v412
        %v785 = vrot.slane %v779, 1
        %v786 = vrot.slane %v780, 1
        %v787 = vrot.slane %v781, 1
        %788 = vrot.lane.b32.xlu0 %v785, 112
        %v789 = vpop.permute.xlu0 %788
        %790 = vrot.lane.b32.xlu0 %v786, 112
        %v791 = vpop.permute.xlu0 %790
        %792 = vrot.lane.b32.xlu0 %v787, 112
        %v793 = vpop.permute.xlu0 %792
        %v794 = vsel %vm330, %v789, %v791
        %v795 = vsel %vm330, %v791, %v793
        %v799 = vadd.f32 %v774, %v789
        %v800 = vadd.f32 %v775, %v794
        %v801 = vadd.f32 %v776, %v795
        %s802 = sld [smem:[#allocation5 + $0x11]]
        %v803 = vstv %s802
        %v804 = vmul.f32 %v803, %v410
        %v805 = vmul.f32 %v803, %v411
        %v806 = vmul.f32 %v803, %v412
        %v810 = vrot.slane %v804, 1
        %v811 = vrot.slane %v805, 1
        %v812 = vrot.slane %v806, 1
        %813 = vrot.lane.b32.xlu0 %v810, 96
        %v814 = vpop.permute.xlu0 %813
        %815 = vrot.lane.b32.xlu0 %v811, 96
        %v816 = vpop.permute.xlu0 %815
        %817 = vrot.lane.b32.xlu0 %v812, 96
        %v818 = vpop.permute.xlu0 %817
        %v819 = vsel %vm356, %v814, %v816
        %v820 = vsel %vm356, %v816, %v818
        %v824 = vadd.f32 %v799, %v814
        %v825 = vadd.f32 %v800, %v819
        %v826 = vadd.f32 %v801, %v820
        %s827 = sld [smem:[#allocation5 + $0x14]]
        %v828 = vstv %s827
        %v829 = vmul.f32 %v828, %v438
        %v830 = vmul.f32 %v828, %v439
        %v831 = vmul.f32 %v828, %v440
        %v835 = vrot.slane %v829, 2
        %v836 = vrot.slane %v830, 2
        %v837 = vrot.slane %v831, 2
        %v841 = vadd.f32 %v824, %v835
        %v842 = vadd.f32 %v825, %v836
        %v843 = vadd.f32 %v826, %v837
        %s844 = sld [smem:[#allocation5 + $0x17]]
        %v845 = vstv %s844
        %v846 = vmul.f32 %v845, %v483
        %v847 = vmul.f32 %v845, %v484
        %v848 = vmul.f32 %v845, %v485
        %v852 = vrot.slane %v846, 2
        %v853 = vrot.slane %v847, 2
        %v854 = vrot.slane %v848, 2
        %855 = vrot.lane.b32.xlu0 %v852, 112
        %v856 = vpop.permute.xlu0 %855
        %857 = vrot.lane.b32.xlu0 %v853, 112
        %v858 = vpop.permute.xlu0 %857
        %859 = vrot.lane.b32.xlu0 %v854, 112
        %v860 = vpop.permute.xlu0 %859
        %v861 = vsel %vm330, %v856, %v858
        %v862 = vsel %vm330, %v858, %v860
        %v866 = vadd.f32 %v841, %v856
        %v867 = vadd.f32 %v842, %v861
        %v868 = vadd.f32 %v843, %v862
        %s869 = sld [smem:[#allocation5 + $0x1a]]
        %v870 = vstv %s869
        %v871 = vmul.f32 %v870, %v483
        %v872 = vmul.f32 %v870, %v484
        %v873 = vmul.f32 %v870, %v485
        %v877 = vrot.slane %v871, 2
        %v878 = vrot.slane %v872, 2
        %v879 = vrot.slane %v873, 2
        %880 = vrot.lane.b32.xlu0 %v877, 96
        %v881 = vpop.permute.xlu0 %880
        %882 = vrot.lane.b32.xlu0 %v878, 96
        %v883 = vpop.permute.xlu0 %882
        %884 = vrot.lane.b32.xlu0 %v879, 96
        %v885 = vpop.permute.xlu0 %884
        %v886 = vsel %vm356, %v881, %v883
        %v887 = vsel %vm356, %v883, %v885
        %v891 = vadd.f32 %v866, %v881
        %v892 = vadd.f32 %v867, %v886
        %v893 = vadd.f32 %v868, %v887
        %vm894 = vcmp.le.s32.totalorder %v306, 14
        %vm895 = vcmp.le.s32.totalorder %v307, 14
        %899 = vrot.lane.b32.xlu0 %v891, 15
        %v900 = vpop.permute.xlu0 %899
        %901 = vrot.lane.b32.xlu0 %v892, 15
        %v902 = vpop.permute.xlu0 %901
        %903 = vrot.lane.b32.xlu0 %v893, 15
        %v904 = vpop.permute.xlu0 %903
        %vm905 = vcmask 121856
        %v906 = vsel %vm905, %v900, %v902
        %v907 = vsel %vm905, %v902, %v904
        %v910 = vsel %vm894, %v906, 0.0
        %v911 = vsel %vm895, %v907, 0.0
        %v912 = vadd.f32 %v709, %v910
        %v913 = vadd.f32 %v710, %v911
        %s914 = sld [smem:[#allocation3]]
        %v915 = vstv %s914
        %v916 = vadd.f32 %v912, %v915
        %v917 = vadd.f32 %v913, %v915
        %v918 = vsub.f32 0.0, %v916
        %v919 = vsub.f32 0.0, %v917
        %v920 = vmul.f32 %v918, 1.442695
        %v921 = vpow.pop %v920
        %v922 = vmul.f32 %v919, 1.442695
        %v923 = vpow.pop %v922
        %v924 = vadd.f32 %v921, 1.0
        %v925 = vadd.f32 %v923, 1.0
        %v926 = vrcp.pop %v924
        %v927 = vrcp.pop %v925
        %s928 = sld [smem:[#allocation4]]
        %v929 = vstv %s928
        %v930 = vmul.f32 %v929, %v926
        %v931 = vmul.f32 %v929, %v927
        %v934 = vcombine.low %v930, %v931
        %936 = vst [vmem:[%s267] sm:$0xff] %v934
        %v937 = vmul.f32 %v268, %v934
        %v938 = vadd.f32 %v937, %v268
        %939 = vst [vmem:[%s260] sm:$0xff] %v938
        %s940 = sand.u32 %s126, 1
        %s941 = scalar_lea.sflag [#allocation7], %s940
        %s942 = sand.u32 %s126, 1
        %s943 = smul.addr %s942, 8
        %s944 = scalar_lea.vmem [#allocation10], %s943
        %s945 = sand.u32 %s152, 1
        %s946 = scalar_lea.sflag [#allocation12], %s945
        %s947 = sand.u32 %s152, 1
        %s948 = smul.addr %s947, 8
        %s949 = scalar_lea.vmem [#allocation11], %s948
        // Predicated region
        $region45: #{tpu_custom_call.1} parent=35 // pred_check
          %p950 = pneg %p136
        $region46: #{tpu_custom_call.1} parent=35 // pred_check_branch
          %952 = sbr.rel (%p950) target = $region48
        $region47: #{tpu_custom_call.1} parent=35 // pred_region
          %s954 = ssub.s32 128, 128
          %955 = vsyncadd %s941, %s954
          %s956 = smul.addr %s29, 2
          %s957 = smul.addr %s956, 64
          %s958 = scalar_lea.hbm %s4, %s957
          %s960 = sshll.u32 %s944, 4
          %s961 = int_to_ptr.vmem [resolvable:$true] %s960
          %963 = dma.vmem_to_hbm [thread:$0]  %s961, 128, %s958, %s941
        $region48: #{tpu_custom_call.1} parent=35 // pred_fallthru
          _
        // Predicated region
        $region49: #{tpu_custom_call.1} parent=35 // pred_check
          %p964 = pneg %p162
        $region50: #{tpu_custom_call.1} parent=35 // pred_check_branch
          %966 = sbr.rel (%p964) target = $region52
        $region51: #{tpu_custom_call.1} parent=35 // pred_region
          %s968 = ssub.s32 128, 128
          %969 = vsyncadd %s946, %s968
          %s970 = smul.addr %s29, 2
          %s971 = smul.addr %s970, 64
          %s972 = scalar_lea.hbm %s5, %s971
          %s974 = sshll.u32 %s949, 4
          %s975 = int_to_ptr.vmem [resolvable:$true] %s974
          %977 = dma.vmem_to_hbm [thread:$0]  %s975, 128, %s972, %s946
        $region52: #{tpu_custom_call.1} parent=35 // pred_fallthru
          _
      $region36: #{tpu_custom_call.1} parent=5 // pred_fallthru
        _
      %p978 = scmp.le.s32.totalorder 2, %s24
      // Predicated region
      $region53: #{tpu_custom_call.1} parent=5 // pred_check
        %p979 = pneg %p978
      $region54: #{tpu_custom_call.1} parent=5 // pred_check_branch
        %981 = sbr.rel (%p979) target = $region56
      $region55: #{tpu_custom_call.1} parent=5 // pred_region
        %s982 = ssub.s32 %s24, 2
        // Predicated region
        $region57: #{tpu_custom_call.1} parent=55 // pred_check
          %p983 = pneg %p142
        $region58: #{tpu_custom_call.1} parent=55 // pred_check_branch
          %985 = sbr.rel (%p983) target = $region60
        $region59: #{tpu_custom_call.1} parent=55 // pred_region
          %s986 = sand.u32 %s127, 1
          %s987 = scalar_lea.sflag [#allocation7], %s986
          %s988 = sand.u32 %s127, 1
          %s989 = smul.addr %s988, 8
          %s990 = scalar_lea.vmem [#allocation10], %s989
          %991 = dma.done %s987, 128
        $region60: #{tpu_custom_call.1} parent=55 // pred_fallthru
          _
        // Predicated region
        $region61: #{tpu_custom_call.1} parent=55 // pred_check
          %p992 = pneg %p168
        $region62: #{tpu_custom_call.1} parent=55 // pred_check_branch
          %994 = sbr.rel (%p992) target = $region64
        $region63: #{tpu_custom_call.1} parent=55 // pred_region
          %s995 = sand.u32 %s153, 1
          %s996 = scalar_lea.sflag [#allocation12], %s995
          %s997 = sand.u32 %s153, 1
          %s998 = smul.addr %s997, 8
          %s999 = scalar_lea.vmem [#allocation11], %s998
          %1000 = dma.done %s996, 128
        $region64: #{tpu_custom_call.1} parent=55 // pred_fallthru
          _
      $region56: #{tpu_custom_call.1} parent=5 // pred_fallthru
        _
    $region6: #{tpu_custom_call.1} parent=1 // loop_footer
      %s28 = sadd.s32 1, %s24
    $region7: #{tpu_custom_call.1} parent=1 // loop_footer_branch
      %23 = sbr.rel target = $region3
    $region8: #{tpu_custom_call.1} parent=1 // loop_exit
      _
    %1001 = vsyncpa [#allocation6], 1
    %s1002 = scalar_lea.sflag [#allocation6], 1
    %1003 = vsyncpa %s1002, 1
    %1004 = vsyncpa [#allocation7], 1
    %s1005 = scalar_lea.sflag [#allocation7], 1
    %1006 = vsyncpa %s1005, 1
    %1007 = vsyncpa [#allocation12], 1
    %s1008 = scalar_lea.sflag [#allocation12], 1
    %1009 = vsyncpa %s1008, 1
    %1010 = vsyncpa [#allocation8], 1
    %s1011 = scalar_lea.sflag [#allocation8], 1
    %1012 = vsyncpa %s1011, 1

</llo_original>
